<compile_context>
chip_gen: v7x
topology: tpu7x:2x2x1
jax: 0.10.0
libtpu: 0.0.40
codegen_flags: <defaults>
</compile_context>

<pallas_src>
import math

import jax
import jax.numpy as jnp
from jax.experimental import pallas as pl
from jax.experimental.pallas import tpu as pltpu

_LANES = 128
_SUBLANES = 8


def _round_up(a, m):
    return ((a + m - 1) // m) * m


# ----------------------------------------------------------------------------
# 1) Score kernel:  scores = sum(x * w_scaled, axis=1) + b_scaled   (lane-dense out)
# ----------------------------------------------------------------------------
def _score_kernel(x_ref, w_ref, b_ref, out_ref):
    # x_ref: (block_rows, C); w_ref: (1, C) already scaled by 1/||W||; b_ref: (1, 1)
    # out_ref: (block_rows // 128, 128) lane-dense score tile.
    x = x_ref[...].astype(jnp.float32)
    w = w_ref[...].astype(jnp.float32)
    s = jnp.sum(x * w, axis=1) + b_ref[0, 0]          # (block_rows,)
    out_ref[...] = s.reshape(out_ref.shape)           # full-lane stores


def topk_pool_scores(x, weight, bias, *, block_rows=None,
                     vmem_limit_bytes=32 * 1024 * 1024):
    """scores = (x @ W^T + b) / ||W|| computed by a Pallas kernel, tiled over nodes."""
    N, C = x.shape

    # Fold the weight norm and bias into the operands in the wrapper (a (1, C)-sized
    # op) so the kernel body is just a multiply + row-reduce + scalar add.
    w32 = weight.astype(jnp.float32)
    inv_norm = jax.lax.rsqrt(jnp.sum(w32 * w32))
    w_scaled = (w32 * inv_norm).reshape(1, C)
    b_scaled = (bias.astype(jnp.float32) * inv_norm).reshape(1, 1)

    # Block sizing: large node tiles (the kernel is purely HBM-bandwidth bound).
    # Budget ~4 MiB per x block (double-buffered by Pallas), cap at 2048 rows so big
    # graphs keep >= 2 grid steps (lets v7x shard the parallel axis over both TCs),
    # and keep the working set far below v7x's 64 MiB VMEM (v5e/v6e: 128 MiB).
    n_pad = _round_up(max(N, 1), _LANES)
    if block_rows is None:
        budget_rows = max(_LANES, (4 * 1024 * 1024) // max(1, C * 4))
        block_rows = max(_LANES, (min(2048, budget_rows) // _LANES) * _LANES)
    if n_pad <= block_rows:
        block_rows = n_pad                      # single block covers all nodes
    else:
        # Multi-block: keep the lane-dense out block's sublane dim a multiple of 8.
        block_rows = max(_SUBLANES * _LANES,
                         (block_rows // (_SUBLANES * _LANES)) * (_SUBLANES * _LANES))
        n_pad = _round_up(N, block_rows)
    grid = n_pad // block_rows
    out_rows = n_pad // _LANES
    blk_out_rows = block_rows // _LANES

    scores2d = pl.pallas_call(
        _score_kernel,
        out_shape=jax.ShapeDtypeStruct((out_rows, _LANES), jnp.float32),
        grid_spec=pltpu.PrefetchScalarGridSpec(
            num_scalar_prefetch=0,
            grid=(grid,),
            in_specs=[
                pl.BlockSpec((block_rows, C), lambda i: (i, 0)),
                pl.BlockSpec((1, C), lambda i: (0, 0)),
                pl.BlockSpec((1, 1), lambda i: (0, 0)),
            ],
            out_specs=pl.BlockSpec((blk_out_rows, _LANES), lambda i: (i, 0)),
        ),
        compiler_params=pltpu.CompilerParams(
            dimension_semantics=("parallel",),          # rows independent
            vmem_limit_bytes=vmem_limit_bytes,          # explicit (v5e default is 16 MiB)
        ),
    )(x, w_scaled, b_scaled)
    # Lane-dense (rows, 128) slab -> logical (N,) score vector (padded tail dropped).
    return scores2d.reshape(-1)[:N]


# ----------------------------------------------------------------------------
# 2) Row-gather kernel:  out[i, :] = x[perm[i], :]   (scalar-prefetch + pl.Element)
# ----------------------------------------------------------------------------
def _gather_rows_kernel(perm_ref, x_ref, out_ref):
    del perm_ref                      # consumed by the index_map (scalar prefetch)
    i = pl.program_id(0)
    out_ref[pl.ds(i, 1), :] = x_ref[...]


def gather_rows(x, perm, *, vmem_limit_bytes=32 * 1024 * 1024):
    """Pallas gather of the kept node rows: each grid step DMAs exactly row perm[i]."""
    N, C = x.shape
    k = perm.shape[0]
    # TODO(synk): for very large k * C the resident (k, C) output should itself be
    # tiled over a second grid axis; fine for typical pooled-graph sizes.
    return pl.pallas_call(
        _gather_rows_kernel,
        out_shape=jax.ShapeDtypeStruct((k, C), x.dtype),
        grid_spec=pltpu.PrefetchScalarGridSpec(
            num_scalar_prefetch=1,                      # perm lives in SMEM
            grid=(k,),
            in_specs=[
                # Data-dependent row indexing: element offset perm[i] along dim 0.
                pl.BlockSpec((pl.Element(1), C), lambda i, perm_s: (perm_s[i], 0)),
            ],
            out_specs=pl.BlockSpec((k, C), lambda i, perm_s: (0, 0)),  # resident out
        ),
        compiler_params=pltpu.CompilerParams(
            dimension_semantics=("arbitrary",),         # output block revisited
            vmem_limit_bytes=vmem_limit_bytes,
        ),
    )(perm, x)


# ----------------------------------------------------------------------------
# Full forward pass
# ----------------------------------------------------------------------------
def topk_pool(x, edge_index, weight, bias, init_ratio, edge_attr=None, batch=None):
    """Forward pass of TopKPool. Single-graph path (batch=None -> zeros), matching
    the module's default behaviour."""
    N = x.shape[0]
    if batch is None:
        batch = jnp.zeros((N,), dtype=jnp.int32)

    scores = topk_pool_scores(x, weight, bias)               # (N,)

    # topk(scores, ratio, batch) for a single graph: k = ceil(ratio * N)
    k = int(math.ceil(init_ratio * N))
    _, perm = jax.lax.top_k(scores, k)                       # descending order
    perm = perm.astype(jnp.int32)

    x_out = gather_rows(x, perm)                             # Pallas row gather
    batch_out = jnp.take(batch, perm)

    # filter_adj: remap kept node indices to [0, k), drop edges touching removed nodes.
    mask_map = jnp.full((N,), -1, dtype=jnp.int32).at[perm].set(
        jnp.arange(k, dtype=jnp.int32))
    row = mask_map[edge_index[0]]
    col = mask_map[edge_index[1]]
    keep = (row >= 0) & (col >= 0)
    # TODO(synk): dynamic edge-count output is not expressible with static shapes;
    # dropped edges are marked with -1 (and zeroed edge_attr) instead of removed.
    new_edge_index = jnp.where(keep, jnp.stack([row, col]), -1)
    new_edge_attr = None if edge_attr is None else jnp.where(
        keep.reshape((-1,) + (1,) * (edge_attr.ndim - 1)), edge_attr, 0)

    return x_out, new_edge_index, new_edge_attr, batch_out, scores, perm


if __name__ == "__main__":
    root = jax.random.PRNGKey(0)

    def run_case(key, N, C, E, ratio):
        k1, k2, k3, k4 = jax.random.split(key, 4)
        x = jax.random.normal(k1, (N, C), dtype=jnp.float32)
        edge_index = jax.random.randint(k2, (2, E), 0, N, dtype=jnp.int32)
        # Deterministic Linear(in_channels, 1) init (uniform(-1/sqrt(C), 1/sqrt(C))).
        bound = 1.0 / math.sqrt(C)
        weight = jax.random.uniform(k3, (1, C), jnp.float32, -bound, bound)
        bias = jax.random.uniform(k4, (1,), jnp.float32, -bound, bound)

        x_out, ei_out, ea_out, batch_out, scores, perm = topk_pool(
            x, edge_index, weight, bias, ratio)
        jax.block_until_ready((x_out, ei_out, batch_out, scores, perm))

        # Plain-JAX reference checks.
        ref_scores = ((x @ weight.T)[:, 0] + bias[0]) / jnp.linalg.norm(weight)
        assert jnp.allclose(scores, ref_scores, atol=1e-5), "score mismatch"
        kk = int(math.ceil(ratio * N))
        assert x_out.shape == (kk, C)
        assert jnp.allclose(x_out, x[perm]), "gather mismatch"
        assert batch_out.shape == (kk,)

    # Small case (single score block), matching the module's toy sizes.
    run_case(jax.random.fold_in(root, 0), N=16, C=32, E=40, ratio=0.5)
    # Slightly larger case exercising the multi-block score path (grid=2, tail block)
    # and the scalar-prefetch row-gather kernel with many rows.
    run_case(jax.random.fold_in(root, 1), N=2500, C=32, E=400, ratio=0.5)

    print("KERNEL_OK")
</pallas_src>

<mosaic_0001>
module attributes {stable_mosaic.version = 11 : i64} {
  func.func @_score_kernel(%arg0: i32, %arg1: memref<128x32xf32, #tpu.memory_space<vmem>>, %arg2: memref<1x32xf32, #tpu.memory_space<vmem>>, %arg3: memref<1x1xf32, #tpu.memory_space<vmem>>, %arg4: memref<1x128xf32, #tpu.memory_space<vmem>>) attributes {dimension_semantics = [#tpu.dimension_semantics<parallel>], iteration_bounds = array<i64: 1>, scalar_prefetch = 0 : i64, scratch_operands = 0 : i64, tpu.core_type = #tpu.core_type<tc>, window_params = [{transform_indices = @transform_0, window_bounds = array<i64: 128, 32>}, {pipeline_mode = #tpu.pipeline_mode<synchronous>, transform_indices = @transform_1, window_bounds = array<i64: 1, 32>}, {pipeline_mode = #tpu.pipeline_mode<synchronous>, transform_indices = @transform_2, window_bounds = array<i64: 1, 1>}, {transform_indices = @transform_3, window_bounds = array<i64: 1, 128>}]} {
    %c0 = arith.constant 0 : index
    %c0_0 = arith.constant 0 : index
    %0 = vector.load %arg1[%c0, %c0_0] : memref<128x32xf32, #tpu.memory_space<vmem>>, vector<128x32xf32>
    %c0_1 = arith.constant 0 : index
    %c0_2 = arith.constant 0 : index
    %1 = vector.load %arg2[%c0_1, %c0_2] : memref<1x32xf32, #tpu.memory_space<vmem>>, vector<1x32xf32>
    %2 = vector.broadcast %1 : vector<1x32xf32> to vector<128x32xf32>
    %3 = arith.mulf %0, %2 : vector<128x32xf32>
    %cst = arith.constant dense<0.000000e+00> : vector<128xf32>
    %4 = vector.multi_reduction <add>, %3, %cst [1] : vector<128x32xf32> to vector<128xf32>
    %c0_3 = arith.constant 0 : index
    %c0_4 = arith.constant 0 : index
    %5 = vector.load %arg3[%c0_3, %c0_4] : memref<1x1xf32, #tpu.memory_space<vmem>>, vector<1x1xf32>
    %6 = vector.extract %5[0, 0] : f32 from vector<1x1xf32>
    %7 = vector.broadcast %6 : f32 to vector<128xf32>
    %8 = arith.addf %4, %7 : vector<128xf32>
    %9 = vector.shape_cast %8 : vector<128xf32> to vector<1x128xf32>
    %c0_5 = arith.constant 0 : index
    %c0_6 = arith.constant 0 : index
    %10 = vector.load %arg4[%c0_5, %c0_6] : memref<1x128xf32, #tpu.memory_space<vmem>>, vector<1x128xf32>
    tpu.vector_store %arg4[%c0_5, %c0_6], %9 {strides = array<i32>} : memref<1x128xf32, #tpu.memory_space<vmem>>, vector<1x128xf32>,
    return
  }
  func.func @transform_0(%arg0: i32) -> (i32, i32) {
    %c0_i32 = arith.constant 0 : i32
    %c0_i32_0 = arith.constant 0 : i32
    return %arg0, %c0_i32 : i32, i32
  }
  func.func @transform_1(%arg0: i32) -> (i32, i32) {
    %c0_i32 = arith.constant 0 : i32
    %c0_i32_0 = arith.constant 0 : i32
    %c0_i32_1 = arith.constant 0 : i32
    return %c0_i32, %c0_i32_0 : i32, i32
  }
  func.func @transform_2(%arg0: i32) -> (i32, i32) {
    %c0_i32 = arith.constant 0 : i32
    %c0_i32_0 = arith.constant 0 : i32
    %c0_i32_1 = arith.constant 0 : i32
    return %c0_i32, %c0_i32_0 : i32, i32
  }
  func.func @transform_3(%arg0: i32) -> (i32, i32) {
    %c0_i32 = arith.constant 0 : i32
    %c0_i32_0 = arith.constant 0 : i32
    return %arg0, %c0_i32 : i32, i32
  }
}

</mosaic_0001>

<llo_original>
// kernel: tpu_custom_call.1
$region0: #{tpu_custom_call.1}
  #allocation0 [shape = 'u32[]', space=smem, size = 0x4, offset = 0x4, fixed_abs, tag = 'smem constant byte address 0x4 - core index']
  #allocation1 [shape = 'u32[144,128]{1,0:T(1,128)}', space=vmem, size = 0x12000, scoped, tag = 'internal scratch']
  #allocation2 [shape = 'f32[1,1]{1,0:T(1,128)S(1)}', space=vmem, size = 0x200, scoped, tag = 'scoped memory for tpu_custom_call.1']
  %s0 = inlined_call_operand.hbm [shape: f32[16,32], index: 0, kind: input, shape index: {}]
  %s1 = inlined_call_operand.vmem [shape: f32[1,32], index: 1, kind: input, shape index: {}]
  %s2 = inlined_call_operand.<no memory space> [shape: f32[1,1], index: 2, kind: input, shape index: {}]
  %s3 = inlined_call_operand.hbm [shape: f32[1,128], index: 3, kind: output, shape index: {}]
  %s4 = sld [smem:[#allocation0]]
  $region26: #{tpu_custom_call.1} parent=0
    _
  %s6 = ssub.s32 1, %s4
  %s7 = scalar_select 0, %s6, %s4
  %v8 = vstv %s2
  %9 = vst [vmem:[#allocation2] sm:$0x1] %v8
  $region1: #{tpu_custom_call.1} parent=0
    #allocation3 [shape = 'u8[65536]{0}', space=vmem, size = 0x10000, scoped, tag = 'input window, operand 0, single buffered']
    #allocation4 [shape = 's32[1]{0}', space=sflag, size = 0x4, scoped, tag = 'scoped memory for tpu_custom_call.1']
    #allocation5 [shape = 's32[1]{0}', space=sflag, size = 0x4, scoped, tag = 'scoped memory for tpu_custom_call.1']
    #allocation6 [shape = 'u8[512]{0}', space=vmem, size = 0x400, scoped, tag = 'output window, operand 0, single buffered']
    %10 = vsyncpa [#allocation4], 0
    %11 = vsyncpa [#allocation5], 0
    // Predicated region
    $region2: #{tpu_custom_call.1} parent=1 // pred_check
      _
    $region3: #{tpu_custom_call.1} parent=1 // pred_check_branch
      %13 = sbr.rel (0) target = $region5
    $region4: #{tpu_custom_call.1} parent=1 // pred_region
      %s15 = ssub.s32 2048, 256
      %16 = vsyncadd [#allocation4], %s15
      %s17 = sshll.u32 [#allocation3], 4
      %s18 = int_to_ptr.vmem [resolvable:$true] %s17
      %23 = dma.hbm_to_vmem [thread:$0]  %s0, 256, %s18, [#allocation4], 128, 128, 8
    $region5: #{tpu_custom_call.1} parent=1 // pred_fallthru
      _
    // Predicated region
    $region6: #{tpu_custom_call.1} parent=1 // pred_check
      _
    $region7: #{tpu_custom_call.1} parent=1 // pred_check_branch
      %25 = sbr.rel (0) target = $region9
    $region8: #{tpu_custom_call.1} parent=1 // pred_region
      _
    $region9: #{tpu_custom_call.1} parent=1 // pred_fallthru
      _
    // Predicated region
    $region10: #{tpu_custom_call.1} parent=1 // pred_check
      _
    $region11: #{tpu_custom_call.1} parent=1 // pred_check_branch
      %27 = sbr.rel (0) target = $region13
    $region12: #{tpu_custom_call.1} parent=1 // pred_region
      _
    $region13: #{tpu_custom_call.1} parent=1 // pred_fallthru
      _
    // Predicated region
    $region14: #{tpu_custom_call.1} parent=1 // pred_check
      _
    $region15: #{tpu_custom_call.1} parent=1 // pred_check_branch
      %29 = sbr.rel (0) target = $region17
    $region16: #{tpu_custom_call.1} parent=1 // pred_region
      %30 = dma.done [#allocation4], 2048
    $region17: #{tpu_custom_call.1} parent=1 // pred_fallthru
      _
    %v31 = vld [vmem:[#allocation3] sm:$0xff]
    %v32 = vld [vmem:[#allocation3 + $0x8] sm:$0xff]
    %v33 = vld [vmem:[#allocation3 + $0x10] sm:$0xff]
    %v34 = vld [vmem:[#allocation3 + $0x18] sm:$0xff]
    %v35 = vld [vmem:[#allocation3 + $0x20] sm:$0xff]
    %v36 = vld [vmem:[#allocation3 + $0x28] sm:$0xff]
    %v37 = vld [vmem:[#allocation3 + $0x30] sm:$0xff]
    %v38 = vld [vmem:[#allocation3 + $0x38] sm:$0xff]
    %v39 = vld [vmem:[#allocation3 + $0x40] sm:$0xff]
    %v40 = vld [vmem:[#allocation3 + $0x48] sm:$0xff]
    %v41 = vld [vmem:[#allocation3 + $0x50] sm:$0xff]
    %v42 = vld [vmem:[#allocation3 + $0x58] sm:$0xff]
    %v43 = vld [vmem:[#allocation3 + $0x60] sm:$0xff]
    %v44 = vld [vmem:[#allocation3 + $0x68] sm:$0xff]
    %v45 = vld [vmem:[#allocation3 + $0x70] sm:$0xff]
    %v46 = vld [vmem:[#allocation3 + $0x78] sm:$0xff]
    %v47 = vld [vmem:[%s1] sm:$0x1]
    %v49 = vlaneseq
    %v50 = vshrl.u32 %v49, 7
    %v51 = vsub.s32 0, %v50
    %v52 = vrot.slane %v47, %v51
    %v54 = vmul.f32 %v31, %v52
    %v55 = vmul.f32 %v32, %v52
    %v56 = vmul.f32 %v33, %v52
    %v57 = vmul.f32 %v34, %v52
    %v58 = vmul.f32 %v35, %v52
    %v59 = vmul.f32 %v36, %v52
    %v60 = vmul.f32 %v37, %v52
    %v61 = vmul.f32 %v38, %v52
    %v62 = vmul.f32 %v39, %v52
    %v63 = vmul.f32 %v40, %v52
    %v64 = vmul.f32 %v41, %v52
    %v65 = vmul.f32 %v42, %v52
    %v66 = vmul.f32 %v43, %v52
    %v67 = vmul.f32 %v44, %v52
    %v68 = vmul.f32 %v45, %v52
    %v69 = vmul.f32 %v46, %v52
    %vm70 = vcmask 261120
    %v71 = vsel %vm70, %v54, 0.0
    %72 = vadd.xlane.f32.xlu0 %v71
    %v73 = vpop.xlane.xlu0 %72
    %v74 = vsel %vm70, %v55, 0.0
    %75 = vadd.xlane.f32.xlu0 %v74
    %v76 = vpop.xlane.xlu0 %75
    %v77 = vsel %vm70, %v56, 0.0
    %78 = vadd.xlane.f32.xlu0 %v77
    %v79 = vpop.xlane.xlu0 %78
    %v80 = vsel %vm70, %v57, 0.0
    %81 = vadd.xlane.f32.xlu0 %v80
    %v82 = vpop.xlane.xlu0 %81
    %v83 = vsel %vm70, %v58, 0.0
    %84 = vadd.xlane.f32.xlu0 %v83
    %v85 = vpop.xlane.xlu0 %84
    %v86 = vsel %vm70, %v59, 0.0
    %87 = vadd.xlane.f32.xlu0 %v86
    %v88 = vpop.xlane.xlu0 %87
    %v89 = vsel %vm70, %v60, 0.0
    %90 = vadd.xlane.f32.xlu0 %v89
    %v91 = vpop.xlane.xlu0 %90
    %v92 = vsel %vm70, %v61, 0.0
    %93 = vadd.xlane.f32.xlu0 %v92
    %v94 = vpop.xlane.xlu0 %93
    %v95 = vsel %vm70, %v62, 0.0
    %96 = vadd.xlane.f32.xlu0 %v95
    %v97 = vpop.xlane.xlu0 %96
    %v98 = vsel %vm70, %v63, 0.0
    %99 = vadd.xlane.f32.xlu0 %v98
    %v100 = vpop.xlane.xlu0 %99
    %v101 = vsel %vm70, %v64, 0.0
    %102 = vadd.xlane.f32.xlu0 %v101
    %v103 = vpop.xlane.xlu0 %102
    %v104 = vsel %vm70, %v65, 0.0
    %105 = vadd.xlane.f32.xlu0 %v104
    %v106 = vpop.xlane.xlu0 %105
    %v107 = vsel %vm70, %v66, 0.0
    %108 = vadd.xlane.f32.xlu0 %v107
    %v109 = vpop.xlane.xlu0 %108
    %v110 = vsel %vm70, %v67, 0.0
    %111 = vadd.xlane.f32.xlu0 %v110
    %v112 = vpop.xlane.xlu0 %111
    %v113 = vsel %vm70, %v68, 0.0
    %114 = vadd.xlane.f32.xlu0 %v113
    %v115 = vpop.xlane.xlu0 %114
    %v116 = vsel %vm70, %v69, 0.0
    %117 = vadd.xlane.f32.xlu0 %v116
    %v118 = vpop.xlane.xlu0 %117
    %v119 = vld [vmem:[#allocation2] sm:$0x1]
    %s120 = vtos %v119
    %v121 = vstv %s120
    %v122 = vadd.f32 %v73, %v121
    %v123 = vadd.f32 %v76, %v121
    %v124 = vadd.f32 %v79, %v121
    %v125 = vadd.f32 %v82, %v121
    %v126 = vadd.f32 %v85, %v121
    %v127 = vadd.f32 %v88, %v121
    %v128 = vadd.f32 %v91, %v121
    %v129 = vadd.f32 %v94, %v121
    %v130 = vadd.f32 %v97, %v121
    %v131 = vadd.f32 %v100, %v121
    %v132 = vadd.f32 %v103, %v121
    %v133 = vadd.f32 %v106, %v121
    %v134 = vadd.f32 %v109, %v121
    %v135 = vadd.f32 %v112, %v121
    %v136 = vadd.f32 %v115, %v121
    %v137 = vadd.f32 %v118, %v121
    %v154 = vlaneseq
    %v155 = vand.u32 %v154, 127
    %v156 = vlaneseq
    %v157 = vshrl.u32 %v156, 7
    %v158 = vsub.s32 %v155, %v157
    %v159 = vrot.slane %v122, %v158
    %v160 = vadd.s32 %v155, 4294967288
    %v161 = vlaneseq
    %v162 = vshrl.u32 %v161, 7
    %v163 = vsub.s32 %v160, %v162
    %v164 = vrot.slane %v123, %v163
    %vm165 = vcmask 130112
    %v166 = vsel %vm165, %v164, %v159
    %v167 = vadd.s32 %v155, 4294967280
    %v168 = vlaneseq
    %v169 = vshrl.u32 %v168, 7
    %v170 = vsub.s32 %v167, %v169
    %v171 = vrot.slane %v124, %v170
    %vm172 = vcmask 195712
    %v173 = vsel %vm172, %v171, %v166
    %v174 = vadd.s32 %v155, 4294967272
    %v175 = vlaneseq
    %v176 = vshrl.u32 %v175, 7
    %v177 = vsub.s32 %v174, %v176
    %v178 = vrot.slane %v125, %v177
    %vm179 = vcmask 261312
    %v180 = vsel %vm179, %v178, %v173
    %v181 = vadd.s32 %v155, 4294967264
    %v182 = vlaneseq
    %v183 = vshrl.u32 %v182, 7
    %v184 = vsub.s32 %v181, %v183
    %v185 = vrot.slane %v126, %v184
    %vm186 = vcmask 326912
    %v187 = vsel %vm186, %v185, %v180
    %v188 = vadd.s32 %v155, 4294967256
    %v189 = vlaneseq
    %v190 = vshrl.u32 %v189, 7
    %v191 = vsub.s32 %v188, %v190
    %v192 = vrot.slane %v127, %v191
    %vm193 = vcmask 392512
    %v194 = vsel %vm193, %v192, %v187
    %v195 = vadd.s32 %v155, 4294967248
    %v196 = vlaneseq
    %v197 = vshrl.u32 %v196, 7
    %v198 = vsub.s32 %v195, %v197
    %v199 = vrot.slane %v128, %v198
    %vm200 = vcmask 458112
    %v201 = vsel %vm200, %v199, %v194
    %v202 = vadd.s32 %v155, 4294967240
    %v203 = vlaneseq
    %v204 = vshrl.u32 %v203, 7
    %v205 = vsub.s32 %v202, %v204
    %v206 = vrot.slane %v129, %v205
    %vm207 = vcmask 523712
    %v208 = vsel %vm207, %v206, %v201
    %v209 = vadd.s32 %v155, 4294967232
    %v210 = vlaneseq
    %v211 = vshrl.u32 %v210, 7
    %v212 = vsub.s32 %v209, %v211
    %v213 = vrot.slane %v130, %v212
    %vm214 = vcmask 589312
    %v215 = vsel %vm214, %v213, %v208
    %v216 = vadd.s32 %v155, 4294967224
    %v217 = vlaneseq
    %v218 = vshrl.u32 %v217, 7
    %v219 = vsub.s32 %v216, %v218
    %v220 = vrot.slane %v131, %v219
    %vm221 = vcmask 654912
    %v222 = vsel %vm221, %v220, %v215
    %v223 = vadd.s32 %v155, 4294967216
    %v224 = vlaneseq
    %v225 = vshrl.u32 %v224, 7
    %v226 = vsub.s32 %v223, %v225
    %v227 = vrot.slane %v132, %v226
    %vm228 = vcmask 720512
    %v229 = vsel %vm228, %v227, %v222
    %v230 = vadd.s32 %v155, 4294967208
    %v231 = vlaneseq
    %v232 = vshrl.u32 %v231, 7
    %v233 = vsub.s32 %v230, %v232
    %v234 = vrot.slane %v133, %v233
    %vm235 = vcmask 786112
    %v236 = vsel %vm235, %v234, %v229
    %v237 = vadd.s32 %v155, 4294967200
    %v238 = vlaneseq
    %v239 = vshrl.u32 %v238, 7
    %v240 = vsub.s32 %v237, %v239
    %v241 = vrot.slane %v134, %v240
    %vm242 = vcmask 851712
    %v243 = vsel %vm242, %v241, %v236
    %v244 = vadd.s32 %v155, 4294967192
    %v245 = vlaneseq
    %v246 = vshrl.u32 %v245, 7
    %v247 = vsub.s32 %v244, %v246
    %v248 = vrot.slane %v135, %v247
    %vm249 = vcmask 917312
    %v250 = vsel %vm249, %v248, %v243
    %v251 = vadd.s32 %v155, 4294967184
    %v252 = vlaneseq
    %v253 = vshrl.u32 %v252, 7
    %v254 = vsub.s32 %v251, %v253
    %v255 = vrot.slane %v136, %v254
    %vm256 = vcmask 982912
    %v257 = vsel %vm256, %v255, %v250
    %v258 = vadd.s32 %v155, 4294967176
    %v259 = vlaneseq
    %v260 = vshrl.u32 %v259, 7
    %v261 = vsub.s32 %v258, %v260
    %v262 = vrot.slane %v137, %v261
    %vm263 = vcmask 1048512
    %v264 = vsel %vm263, %v262, %v257
    %266 = vst [vmem:[#allocation6] sm:$0x1] %v264
    // Predicated region
    $region18: #{tpu_custom_call.1} parent=1 // pred_check
      _
    $region19: #{tpu_custom_call.1} parent=1 // pred_check_branch
      %268 = sbr.rel (0) target = $region21
    $region20: #{tpu_custom_call.1} parent=1 // pred_region
      %s270 = ssub.s32 16, 16
      %271 = vsyncadd [#allocation5], %s270
      %s273 = sshll.u32 [#allocation6], 4
      %s274 = int_to_ptr.vmem [resolvable:$true] %s273
      %276 = dma.vmem_to_hbm [thread:$0]  %s274, 16, %s3, [#allocation5]
    $region21: #{tpu_custom_call.1} parent=1 // pred_fallthru
      _
    // Predicated region
    $region22: #{tpu_custom_call.1} parent=1 // pred_check
      _
    $region23: #{tpu_custom_call.1} parent=1 // pred_check_branch
      %278 = sbr.rel (0) target = $region25
    $region24: #{tpu_custom_call.1} parent=1 // pred_region
      %279 = dma.done [#allocation5], 16
    $region25: #{tpu_custom_call.1} parent=1 // pred_fallthru
      _
    %280 = vsyncpa [#allocation4], 1
    %281 = vsyncpa [#allocation5], 1

</llo_original>
